<compile_context>
chip_gen: v7x
topology: tpu7x:2x2x1
jax: 0.10.0
libtpu: 0.0.40
codegen_flags: <defaults>
</compile_context>

<pallas_src>
import jax
import jax.numpy as jnp
from jax.experimental import pallas as pl
from jax.experimental.pallas import tpu as pltpu


def _round_up(v: int, m: int) -> int:
    return ((v + m - 1) // m) * m


def _subspace_kernel(x_ref, w_ref, b_ref, m_ref, o_ref):
    # x_ref: (TB, H)       bf16   streamed batch tile (double-buffered)
    # w_ref: (H, OUTP)     bf16   resident, pre-transposed, lane-padded
    # b_ref: (1, OUTP)     f32    resident
    # m_ref: (OUTP, OUTP)  bf16   resident block-diagonal group mask
    # o_ref: (TB, OUTP)    out dtype (f32 by default)
    y = jnp.dot(x_ref[...], w_ref[...], preferred_element_type=jnp.float32)
    y = jnp.tanh(y + b_ref[...])                       # f32 (safe on v5e: no bf16 EUP)

    # Per-group sum of squares via a block-diagonal ones mask on the MXU.
    # bf16 operands + f32 accumulation (avoid the slow f32xf32 MXU path).
    y2 = (y * y).astype(m_ref.dtype)
    sq = jnp.dot(y2, m_ref[...], preferred_element_type=jnp.float32)

    # 1 / max(||y_group||, 1e-12)  ==  rsqrt(max(sq, 1e-24))   (PyTorch eps)
    inv = jax.lax.rsqrt(jnp.maximum(sq, 1e-24))
    o_ref[...] = (y * inv).astype(o_ref.dtype)


def subspace_forward(x, weight, bias, *, len_subspace, subspace_dim,
                     block_b=1024, compute_dtype=jnp.bfloat16,
                     out_dtype=jnp.float32):
    """x: (B, H); weight: (L*S, H) [PyTorch layout]; bias: (L*S,).
    Returns (B, L, S) in out_dtype (float32 by default, matching the module)."""
    bsz, hidden = x.shape
    out_dim = len_subspace * subspace_dim
    assert weight.shape == (out_dim, hidden)
    assert bias.shape == (out_dim,)

    # Lane-dense output: pad the projection dim to a multiple of 128 so the
    # output stores are unmasked full-lane vst's.  Padded columns have zero
    # weight/bias -> tanh(0) = 0 -> output 0; sliced off below.
    out_dim_p = _round_up(out_dim, 128)

    x_c = x if x.dtype == compute_dtype else x.astype(compute_dtype)

    # One-time wrapper transpose: (H, OUTP) so the kernel matmul needs no
    # per-grid-step relayout of the resident weight.
    w_t = jnp.zeros((hidden, out_dim_p), compute_dtype)
    w_t = w_t.at[:, :out_dim].set(weight.T.astype(compute_dtype))

    b2 = jnp.zeros((1, out_dim_p), jnp.float32)
    b2 = b2.at[:, :out_dim].set(bias.astype(jnp.float32))

    # Block-diagonal group mask (bf16, resident, single-buffered).  Padded
    # columns fall into their own all-zero groups because out_dim = L*S.
    gidx = jnp.arange(out_dim_p, dtype=jnp.int32) // subspace_dim
    mask = (gidx[:, None] == gidx[None, :]).astype(compute_dtype)
    # NOTE: for out_dim >= ~512, a (OUTP, L) pooling factorization
    # sq = ((y*y) @ G) @ G.T cuts mask VMEM and FLOPs by ~subspace_dim/2.

    # ---- per-generation VMEM budget & batch-tile selection ------------------
    try:
        vmem_cap = int(pltpu.get_tpu_info().vmem_capacity_bytes)
    except Exception:  # pragma: no cover - conservative (v7x-sized) fallback
        vmem_cap = 64 * 1024 * 1024
    vmem_budget = int(vmem_cap * 0.75)          # headroom for compiler scratch

    c_item = jnp.dtype(compute_dtype).itemsize
    o_item = jnp.dtype(out_dtype).itemsize
    resident_bytes = (hidden * out_dim_p * c_item           # weight (Buffered(1))
                      + 8 * out_dim_p * 4                   # bias (sublane-padded)
                      + out_dim_p * out_dim_p * c_item)     # mask (Buffered(1))
    row_bytes = hidden * c_item + out_dim_p * o_item        # x row + out row
    avail = vmem_budget - resident_bytes - 2 * 1024 * 1024
    max_tb = max(8, (avail // (2 * row_bytes)) // 8 * 8)    # 2x: double-buffered

    tb = min(block_b, max_tb)
    # Keep >=2 grid steps (v7x megacore) / ~4 steps (DMA pipelining) when the
    # batch is large enough; otherwise one tile covers the whole batch.
    if bsz >= 512:
        tb = min(tb, max(128, _round_up(pl.cdiv(bsz, 4), 8)))
    elif bsz >= 64:
        tb = min(tb, _round_up(pl.cdiv(bsz, 2), 8))
    tb = int(max(8, min(tb, _round_up(bsz, 8))))
    grid = (pl.cdiv(bsz, tb),)          # ragged last tile; no batch padding

    vmem_limit = int(min(
        vmem_budget,
        max(32 * 1024 * 1024,
            resident_bytes + 2 * tb * row_bytes + 8 * 1024 * 1024)))
    # NOTE(synk): if the single-buffered weight alone blows this budget
    # (huge H * out_dim on v7x), shrink tb first; only then add a K grid axis
    # with an f32 VMEM accumulator.

    cost = pl.CostEstimate(
        flops=(2 * bsz * hidden * out_dim_p           # linear
               + 2 * bsz * out_dim_p * out_dim_p      # mask matmul
               + 4 * bsz * out_dim_p),                # square / scale / add
        transcendentals=2 * bsz * out_dim_p,          # tanh + rsqrt
        bytes_accessed=(bsz * hidden * c_item
                        + hidden * out_dim_p * c_item
                        + out_dim_p * out_dim_p * c_item
                        + out_dim_p * 4
                        + bsz * out_dim_p * o_item),
    )

    resident = dict(pipeline_mode=pl.Buffered(1))     # never re-fetched

    out_flat = pl.pallas_call(
        _subspace_kernel,
        out_shape=jax.ShapeDtypeStruct((bsz, out_dim_p), out_dtype),
        grid_spec=pltpu.PrefetchScalarGridSpec(
            num_scalar_prefetch=0,
            grid=grid,
            in_specs=[
                pl.BlockSpec((tb, hidden), lambda i: (i, 0)),                 # x: streamed
                pl.BlockSpec((hidden, out_dim_p), lambda i: (0, 0), **resident),
                pl.BlockSpec((1, out_dim_p), lambda i: (0, 0), **resident),
                pl.BlockSpec((out_dim_p, out_dim_p), lambda i: (0, 0), **resident),
            ],
            out_specs=pl.BlockSpec((tb, out_dim_p), lambda i: (i, 0)),
        ),
        compiler_params=pltpu.CompilerParams(
            dimension_semantics=("parallel",),     # independent batch tiles
            vmem_limit_bytes=vmem_limit,
        ),
        cost_estimate=cost,
    )(x_c, w_t, b2, mask)

    if out_dim_p != out_dim:
        out_flat = out_flat[:, :out_dim]
    return out_flat.reshape(bsz, len_subspace, subspace_dim)


if __name__ == "__main__":
    # Small shapes consistent with the module.
    batch = 2
    hidden_dim = 32
    subspace_dim = 16
    len_subspace = 4
    out_dim = subspace_dim * len_subspace

    key = jax.random.PRNGKey(0)
    kx, kw, kb = jax.random.split(key, 3)

    # Deterministic parameter init (mimic nn.Linear uniform(-1/sqrt(H), 1/sqrt(H))).
    bound = 1.0 / (hidden_dim ** 0.5)
    weight = jax.random.uniform(kw, (out_dim, hidden_dim), jnp.float32, -bound, bound)
    bias = jax.random.uniform(kb, (out_dim,), jnp.float32, -bound, bound)

    x = jax.random.normal(kx, (batch, hidden_dim), jnp.float32)

    out = subspace_forward(
        x, weight, bias, len_subspace=len_subspace, subspace_dim=subspace_dim
    )
    out = jax.block_until_ready(out)

    # Sanity check against pure-JAX f32 reference (bf16 matmul operands =>
    # bf16-level tolerance; bf16 group-reduction adds a small norm error).
    ref = jnp.tanh(x @ weight.T + bias).reshape(batch, len_subspace, subspace_dim)
    ref = ref / jnp.maximum(jnp.linalg.norm(ref, axis=-1, keepdims=True), 1e-12)
    assert out.shape == (batch, len_subspace, subspace_dim)
    assert jnp.allclose(out, ref, atol=3e-2, rtol=3e-2)
    # Unit-norm check on the kernel output itself (loosened for the bf16
    # group-reduction per perf-review correctness notes).
    norms = jnp.linalg.norm(out, axis=-1)
    assert jnp.allclose(norms, jnp.ones_like(norms), atol=1e-2)

    print("KERNEL_OK")
</pallas_src>

<mosaic_0001>
module attributes {stable_mosaic.version = 11 : i64} {
  func.func @_subspace_kernel(%arg0: i32, %arg1: memref<8x32xbf16, #tpu.memory_space<vmem>>, %arg2: memref<32x128xbf16, #tpu.memory_space<vmem>>, %arg3: memref<1x128xf32, #tpu.memory_space<vmem>>, %arg4: memref<128x128xbf16, #tpu.memory_space<vmem>>, %arg5: memref<8x128xf32, #tpu.memory_space<vmem>>) attributes {dimension_semantics = [#tpu.dimension_semantics<parallel>], iteration_bounds = array<i64: 1>, scalar_prefetch = 0 : i64, scratch_operands = 0 : i64, tpu.core_type = #tpu.core_type<tc>, window_params = [{transform_indices = @transform_0, window_bounds = array<i64: 8, 32>}, {pipeline_mode = #tpu.pipeline_mode<synchronous>, transform_indices = @transform_1, window_bounds = array<i64: 32, 128>}, {pipeline_mode = #tpu.pipeline_mode<synchronous>, transform_indices = @transform_2, window_bounds = array<i64: 1, 128>}, {pipeline_mode = #tpu.pipeline_mode<synchronous>, transform_indices = @transform_3, window_bounds = array<i64: 128, 128>}, {transform_indices = @transform_4, window_bounds = array<i64: 8, 128>}]} {
    %c0 = arith.constant 0 : index
    %c0_0 = arith.constant 0 : index
    %0 = vector.load %arg1[%c0, %c0_0] : memref<8x32xbf16, #tpu.memory_space<vmem>>, vector<8x32xbf16>
    %c0_1 = arith.constant 0 : index
    %c0_2 = arith.constant 0 : index
    %1 = vector.load %arg2[%c0_1, %c0_2] : memref<32x128xbf16, #tpu.memory_space<vmem>>, vector<32x128xbf16>
    %cst = arith.constant dense<0.000000e+00> : vector<8x128xf32>
    %2 = tpu.matmul %0, %1, %cst {dimension_numbers = #tpu.dot_dimension_numbers<[1], [0], [0], [1], [0, 0, 1, 1], [], []>} : vector<8x32xbf16>, vector<32x128xbf16>, vector<8x128xf32> -> vector<8x128xf32>
    %c0_3 = arith.constant 0 : index
    %c0_4 = arith.constant 0 : index
    %3 = vector.load %arg3[%c0_3, %c0_4] : memref<1x128xf32, #tpu.memory_space<vmem>>, vector<1x128xf32>
    %4 = vector.broadcast %3 : vector<1x128xf32> to vector<8x128xf32>
    %5 = arith.addf %2, %4 : vector<8x128xf32>
    %6 = math.tanh %5 : vector<8x128xf32>
    %7 = arith.mulf %6, %6 : vector<8x128xf32>
    %8 = arith.truncf %7 : vector<8x128xf32> to vector<8x128xbf16>
    %c0_5 = arith.constant 0 : index
    %c0_6 = arith.constant 0 : index
    %9 = vector.load %arg4[%c0_5, %c0_6] : memref<128x128xbf16, #tpu.memory_space<vmem>>, vector<128x128xbf16>
    %cst_7 = arith.constant dense<0.000000e+00> : vector<8x128xf32>
    %10 = tpu.matmul %8, %9, %cst_7 {dimension_numbers = #tpu.dot_dimension_numbers<[1], [0], [0], [1], [0, 0, 1, 1], [], []>} : vector<8x128xbf16>, vector<128x128xbf16>, vector<8x128xf32> -> vector<8x128xf32>
    %cst_8 = arith.constant 1.000000e-24 : f32
    %11 = vector.broadcast %cst_8 : f32 to vector<8x128xf32>
    %12 = arith.maximumf %10, %11 : vector<8x128xf32>
    %13 = math.rsqrt %12 : vector<8x128xf32>
    %14 = arith.mulf %6, %13 : vector<8x128xf32>
    %c0_9 = arith.constant 0 : index
    %c0_10 = arith.constant 0 : index
    %15 = vector.load %arg5[%c0_9, %c0_10] : memref<8x128xf32, #tpu.memory_space<vmem>>, vector<8x128xf32>
    tpu.vector_store %arg5[%c0_9, %c0_10], %14 {strides = array<i32>} : memref<8x128xf32, #tpu.memory_space<vmem>>, vector<8x128xf32>,
    return
  }
  func.func @transform_0(%arg0: i32) -> (i32, i32) {
    %c0_i32 = arith.constant 0 : i32
    %c0_i32_0 = arith.constant 0 : i32
    return %arg0, %c0_i32 : i32, i32
  }
  func.func @transform_1(%arg0: i32) -> (i32, i32) {
    %c0_i32 = arith.constant 0 : i32
    %c0_i32_0 = arith.constant 0 : i32
    %c0_i32_1 = arith.constant 0 : i32
    return %c0_i32, %c0_i32_0 : i32, i32
  }
  func.func @transform_2(%arg0: i32) -> (i32, i32) {
    %c0_i32 = arith.constant 0 : i32
    %c0_i32_0 = arith.constant 0 : i32
    %c0_i32_1 = arith.constant 0 : i32
    return %c0_i32, %c0_i32_0 : i32, i32
  }
  func.func @transform_3(%arg0: i32) -> (i32, i32) {
    %c0_i32 = arith.constant 0 : i32
    %c0_i32_0 = arith.constant 0 : i32
    %c0_i32_1 = arith.constant 0 : i32
    return %c0_i32, %c0_i32_0 : i32, i32
  }
  func.func @transform_4(%arg0: i32) -> (i32, i32) {
    %c0_i32 = arith.constant 0 : i32
    %c0_i32_0 = arith.constant 0 : i32
    return %arg0, %c0_i32 : i32, i32
  }
}

</mosaic_0001>

<llo_original>
// kernel: tpu_custom_call.1
$region0: #{tpu_custom_call.1}
  #allocation0 [shape = 'u32[]', space=smem, size = 0x4, offset = 0x4, fixed_abs, tag = 'smem constant byte address 0x4 - core index']
  #allocation1 [shape = 'u32[144,128]{1,0:T(1,128)}', space=vmem, size = 0x12000, scoped, tag = 'internal scratch']
  %s0 = inlined_call_operand.hbm [shape: bf16[2,32], index: 0, kind: input, shape index: {}]
  %s1 = inlined_call_operand.hbm [shape: bf16[32,128], index: 1, kind: input, shape index: {}]
  %s2 = inlined_call_operand.vmem [shape: f32[1,128], index: 2, kind: input, shape index: {}]
  %s3 = inlined_call_operand.hbm [shape: bf16[128,128], index: 3, kind: input, shape index: {}]
  %s4 = inlined_call_operand.hbm [shape: f32[2,128], index: 4, kind: output, shape index: {}]
  %s5 = sld [smem:[#allocation0]]
  $region38: #{tpu_custom_call.1} parent=0
    _
  %s7 = ssub.s32 1, %s5
  %s8 = scalar_select 0, %s7, %s5
  $region1: #{tpu_custom_call.1} parent=0
    #allocation2 [shape = 'u8[2048]{0}', space=vmem, size = 0x800, scoped, tag = 'input window, operand 0, single buffered']
    #allocation3 [shape = 's32[1]{0}', space=sflag, size = 0x4, scoped, tag = 'scoped memory for tpu_custom_call.1']
    #allocation4 [shape = 's32[1]{0}', space=sflag, size = 0x4, scoped, tag = 'scoped memory for tpu_custom_call.1']
    #allocation5 [shape = 'u8[8192]{0}', space=vmem, size = 0x2000, scoped, tag = 'input window, operand 1, single buffered']
    #allocation6 [shape = 's32[1]{0}', space=sflag, size = 0x4, scoped, tag = 'scoped memory for tpu_custom_call.1']
    #allocation7 [shape = 'u8[32768]{0}', space=vmem, size = 0x8000, scoped, tag = 'input window, operand 3, single buffered']
    #allocation8 [shape = 'u8[4096]{0}', space=vmem, size = 0x1000, scoped, tag = 'output window, operand 0, single buffered']
    %9 = vsyncpa [#allocation3], 0
    %10 = vsyncpa [#allocation6], 0
    %11 = vsyncpa [#allocation4], 0
    // Predicated region
    $region2: #{tpu_custom_call.1} parent=1 // pred_check
      _
    $region3: #{tpu_custom_call.1} parent=1 // pred_check_branch
      %13 = sbr.rel (0) target = $region5
    $region4: #{tpu_custom_call.1} parent=1 // pred_region
      %s15 = ssub.s32 64, 16
      %16 = vsyncadd [#allocation3], %s15
      %s17 = sshll.u32 [#allocation2], 4
      %s18 = int_to_ptr.vmem [resolvable:$true] %s17
      %23 = dma.hbm_to_vmem [thread:$0]  %s0, 16, %s18, [#allocation3], 16, 16, 1
    $region5: #{tpu_custom_call.1} parent=1 // pred_fallthru
      _
    // Predicated region
    $region6: #{tpu_custom_call.1} parent=1 // pred_check
      _
    $region7: #{tpu_custom_call.1} parent=1 // pred_check_branch
      %25 = sbr.rel (0) target = $region9
    $region8: #{tpu_custom_call.1} parent=1 // pred_region
      %s27 = ssub.s32 256, 256
      %28 = vsyncadd [#allocation6], %s27
      %s29 = sshll.u32 [#allocation5], 4
      %s30 = int_to_ptr.vmem [resolvable:$true] %s29
      %35 = dma.hbm_to_vmem [thread:$0]  %s1, 256, %s30, [#allocation6], 64, 64, 4
    $region9: #{tpu_custom_call.1} parent=1 // pred_fallthru
      _
    // Predicated region
    $region10: #{tpu_custom_call.1} parent=1 // pred_check
      _
    $region11: #{tpu_custom_call.1} parent=1 // pred_check_branch
      %37 = sbr.rel (0) target = $region13
    $region12: #{tpu_custom_call.1} parent=1 // pred_region
      _
    $region13: #{tpu_custom_call.1} parent=1 // pred_fallthru
      _
    // Predicated region
    $region14: #{tpu_custom_call.1} parent=1 // pred_check
      _
    $region15: #{tpu_custom_call.1} parent=1 // pred_check_branch
      %39 = sbr.rel (0) target = $region17
    $region16: #{tpu_custom_call.1} parent=1 // pred_region
      %s41 = ssub.s32 1024, 1024
      %42 = vsyncadd [#allocation6], %s41
      %s43 = sshll.u32 [#allocation7], 4
      %s44 = int_to_ptr.vmem [resolvable:$true] %s43
      %49 = dma.hbm_to_vmem [thread:$0]  %s3, 1024, %s44, [#allocation6], 64, 64, 4
    $region17: #{tpu_custom_call.1} parent=1 // pred_fallthru
      _
    // Predicated region
    $region18: #{tpu_custom_call.1} parent=1 // pred_check
      _
    $region19: #{tpu_custom_call.1} parent=1 // pred_check_branch
      %51 = sbr.rel (0) target = $region21
    $region20: #{tpu_custom_call.1} parent=1 // pred_region
      %52 = dma.done [#allocation3], 64
    $region21: #{tpu_custom_call.1} parent=1 // pred_fallthru
      _
    // Predicated region
    $region22: #{tpu_custom_call.1} parent=1 // pred_check
      _
    $region23: #{tpu_custom_call.1} parent=1 // pred_check_branch
      %54 = sbr.rel (0) target = $region25
    $region24: #{tpu_custom_call.1} parent=1 // pred_region
      %55 = dma.done [#allocation6], 256
    $region25: #{tpu_custom_call.1} parent=1 // pred_fallthru
      _
    // Predicated region
    $region26: #{tpu_custom_call.1} parent=1 // pred_check
      _
    $region27: #{tpu_custom_call.1} parent=1 // pred_check_branch
      %57 = sbr.rel (0) target = $region29
    $region28: #{tpu_custom_call.1} parent=1 // pred_region
      %58 = dma.done [#allocation6], 1024
    $region29: #{tpu_custom_call.1} parent=1 // pred_fallthru
      _
    %v60 = vld [vmem:[#allocation2] sm:$0x1]
    %v61 = vld [vmem:[#allocation2 + $0x1] sm:$0x1]
    %v62 = vld [vmem:[#allocation2 + $0x2] sm:$0x1]
    %v63 = vld [vmem:[#allocation2 + $0x3] sm:$0x1]
    %v64 = vld [vmem:[#allocation5] sm:$0xf]
    %v65 = vld [vmem:[#allocation5 + $0x4] sm:$0xf]
    %v66 = vld [vmem:[#allocation5 + $0x8] sm:$0xf]
    %v67 = vld [vmem:[#allocation5 + $0xc] sm:$0xf]
    %v68 = vld [vmem:[%s2] sm:$0x1]
    %v70 = vlaneseq
    %v71 = vshrl.u32 %v70, 7
    %v72 = vsub.s32 0, %v71
    %v73 = vrot.slane %v68, %v72
    %v79 = vcombine.low %v60, %v61
    %v80 = vcombine.low %v62, %v63
    %v82 = vunpack.c.l.s4 1966171168
    %v83 = vunpack.c.0.s8 %v82
    %v84 = vlaneseq
    %v85 = vshrl.u32 %v84, 7
    %v86 = vsub.s32 %v83, %v85
    %v87 = vrot.slane %v79, %v86
    %v89 = vunpack.c.l.s4 1966171168
    %v90 = vunpack.c.0.s8 %v89
    %v91 = vlaneseq
    %v92 = vshrl.u32 %v91, 7
    %v93 = vsub.s32 %v90, %v92
    %v94 = vrot.slane %v80, %v93
    %v95 = vcombine.low %v87, %v94
    %v97 = vunpack.c.l.s4 1966171168
    %v98 = vunpack.c.0.s8 %v97
    %v99 = vlaneseq
    %v100 = vshrl.u32 %v99, 7
    %v101 = vsub.s32 %v98, %v100
    %v102 = vrot.slane %v95, %v101
    %v107 = vunpack.c.l.b16 %v64
    %v108 = vunpack.c.l.b16 %v65
    %v109 = vunpack.c.l.b16 %v66
    %v110 = vunpack.c.l.b16 %v67
    %v111 = vpack.c.b16 %v108, %v107
    %v112 = vpack.c.b16 %v110, %v109
    %vm115 = vcmask 261120
    %v117 = vsel %vm115, %v102, 0
    %119 = vmatprep.subr.bf16.mxu0 0
    %120 = vmatpush1.bf16.msra.mxu0 %v111
    %121 = vmatprep.subr.bf16.mxu0 0
    %122 = vmatpush1.bf16.msra.mxu0 %v112
    %123 = vmatprep.subr.bf16.mxu0 0
    %124 = vmatpush1.bf16.msra.mxu0 0
    %125 = vmatprep.subr.bf16.mxu0 0
    %126 = vmatpush1.bf16.msra.mxu0 0
    %127 = vmatprep.subr.bf16.mxu0 0
    %128 = vmatpush1.bf16.msra.mxu0 0
    %129 = vmatprep.subr.bf16.mxu0 0
    %130 = vmatpush1.bf16.msra.mxu0 0
    %131 = vmatprep.subr.bf16.mxu0 0
    %132 = vmatpush1.bf16.msra.mxu0 0
    %133 = vmatprep.subr.bf16.mxu0 0
    %134 = vmatpush1.bf16.msra.mxu0 0
    %135 = vmatprep.subr.bf16.mxu0 0
    %136 = vmatpush1.bf16.msra.mxu0 0
    %137 = vmatprep.subr.bf16.mxu0 0
    %138 = vmatpush1.bf16.msra.mxu0 0
    %139 = vmatprep.subr.bf16.mxu0 0
    %140 = vmatpush1.bf16.msra.mxu0 0
    %141 = vmatprep.subr.bf16.mxu0 0
    %142 = vmatpush1.bf16.msra.mxu0 0
    %143 = vmatprep.subr.bf16.mxu0 0
    %144 = vmatpush1.bf16.msra.mxu0 0
    %145 = vmatprep.subr.bf16.mxu0 0
    %146 = vmatpush1.bf16.msra.mxu0 0
    %147 = vmatprep.subr.bf16.mxu0 0
    %148 = vmatpush1.bf16.msra.mxu0 0
    %149 = vmatprep.subr.bf16.mxu0 0
    %150 = vmatpush1.bf16.msra.mxu0 0
    %151 = vmatprep.mubr.bf16.mxu0 0
    %152 = vmatmul.mubr.bf16.gmra.mrb[0].mxu0 %v117
    %v153 = vpop.f32.mrb[0].mxu0
    %v154 = vadd.f32 %v73, %v153
    %v155 = vpop.f32.mrb[0].mxu0
    %v156 = vpop.f32.mrb[0].mxu0
    %v157 = vpop.f32.mrb[0].mxu0
    %158 = vdwg.mxu0
    %v159 = vtanh.pop %v154
    %v160 = vmul.f32 %v159, %v159
    %v161 = vpack.c.bf16 %v160, %v160
    %v162 = vld [vmem:[#allocation7] sm:$0xf]
    %v163 = vld [vmem:[#allocation7 + $0x4] sm:$0xf]
    %v164 = vld [vmem:[#allocation7 + $0x8] sm:$0xf]
    %v165 = vld [vmem:[#allocation7 + $0xc] sm:$0xf]
    %v166 = vld [vmem:[#allocation7 + $0x10] sm:$0xf]
    %v167 = vld [vmem:[#allocation7 + $0x14] sm:$0xf]
    %v168 = vld [vmem:[#allocation7 + $0x18] sm:$0xf]
    %v169 = vld [vmem:[#allocation7 + $0x1c] sm:$0xf]
    %v170 = vld [vmem:[#allocation7 + $0x20] sm:$0xf]
    %v171 = vld [vmem:[#allocation7 + $0x24] sm:$0xf]
    %v172 = vld [vmem:[#allocation7 + $0x28] sm:$0xf]
    %v173 = vld [vmem:[#allocation7 + $0x2c] sm:$0xf]
    %v174 = vld [vmem:[#allocation7 + $0x30] sm:$0xf]
    %v175 = vld [vmem:[#allocation7 + $0x34] sm:$0xf]
    %v176 = vld [vmem:[#allocation7 + $0x38] sm:$0xf]
    %v177 = vld [vmem:[#allocation7 + $0x3c] sm:$0xf]
    %v194 = vunpack.c.l.b16 %v162
    %v195 = vunpack.c.l.b16 %v163
    %v196 = vunpack.c.l.b16 %v164
    %v197 = vunpack.c.l.b16 %v165
    %v198 = vunpack.c.l.b16 %v166
    %v199 = vunpack.c.l.b16 %v167
    %v200 = vunpack.c.l.b16 %v168
    %v201 = vunpack.c.l.b16 %v169
    %v202 = vunpack.c.l.b16 %v170
    %v203 = vunpack.c.l.b16 %v171
    %v204 = vunpack.c.l.b16 %v172
    %v205 = vunpack.c.l.b16 %v173
    %v206 = vunpack.c.l.b16 %v174
    %v207 = vunpack.c.l.b16 %v175
    %v208 = vunpack.c.l.b16 %v176
    %v209 = vunpack.c.l.b16 %v177
    %v210 = vpack.c.b16 %v195, %v194
    %v211 = vpack.c.b16 %v197, %v196
    %v212 = vpack.c.b16 %v199, %v198
    %v213 = vpack.c.b16 %v201, %v200
    %v214 = vpack.c.b16 %v203, %v202
    %v215 = vpack.c.b16 %v205, %v204
    %v216 = vpack.c.b16 %v207, %v206
    %v217 = vpack.c.b16 %v209, %v208
    %226 = vmatprep.subr.bf16.mxu0 0
    %227 = vmatpush1.bf16.msra.mxu0 %v210
    %228 = vmatprep.subr.bf16.mxu0 0
    %229 = vmatpush1.bf16.msra.mxu0 %v211
    %230 = vmatprep.subr.bf16.mxu0 0
    %231 = vmatpush1.bf16.msra.mxu0 %v212
    %232 = vmatprep.subr.bf16.mxu0 0
    %233 = vmatpush1.bf16.msra.mxu0 %v213
    %234 = vmatprep.subr.bf16.mxu0 0
    %235 = vmatpush1.bf16.msra.mxu0 %v214
    %236 = vmatprep.subr.bf16.mxu0 0
    %237 = vmatpush1.bf16.msra.mxu0 %v215
    %238 = vmatprep.subr.bf16.mxu0 0
    %239 = vmatpush1.bf16.msra.mxu0 %v216
    %240 = vmatprep.subr.bf16.mxu0 0
    %241 = vmatpush1.bf16.msra.mxu0 %v217
    %242 = vmatprep.subr.bf16.mxu0 0
    %243 = vmatpush1.bf16.msra.mxu0 0
    %244 = vmatprep.subr.bf16.mxu0 0
    %245 = vmatpush1.bf16.msra.mxu0 0
    %246 = vmatprep.subr.bf16.mxu0 0
    %247 = vmatpush1.bf16.msra.mxu0 0
    %248 = vmatprep.subr.bf16.mxu0 0
    %249 = vmatpush1.bf16.msra.mxu0 0
    %250 = vmatprep.subr.bf16.mxu0 0
    %251 = vmatpush1.bf16.msra.mxu0 0
    %252 = vmatprep.subr.bf16.mxu0 0
    %253 = vmatpush1.bf16.msra.mxu0 0
    %254 = vmatprep.subr.bf16.mxu0 0
    %255 = vmatpush1.bf16.msra.mxu0 0
    %256 = vmatprep.subr.bf16.mxu0 0
    %257 = vmatpush1.bf16.msra.mxu0 0
    %258 = vmatprep.mubr.bf16.mxu0 0
    %259 = vmatmul.mubr.bf16.gmra.mrb[0].mxu0 %v161
    %v260 = vpop.f32.mrb[0].mxu0
    %v261 = vadd.f32 0.0, %v260
    %v262 = vpop.f32.mrb[0].mxu0
    %v263 = vpop.f32.mrb[0].mxu0
    %v264 = vpop.f32.mrb[0].mxu0
    %265 = vdwg.mxu0
    %v266 = vmax.f32 %v261, 1e-24
    %v267 = vrsqrt.pop %v266
    %v268 = vmul.f32 %v159, %v267
    %269 = vst [vmem:[#allocation8] sm:$0xff] %v268
    // Predicated region
    $region30: #{tpu_custom_call.1} parent=1 // pred_check
      _
    $region31: #{tpu_custom_call.1} parent=1 // pred_check_branch
      %271 = sbr.rel (0) target = $region33
    $region32: #{tpu_custom_call.1} parent=1 // pred_region
      %s273 = ssub.s32 128, 32
      %274 = vsyncadd [#allocation4], %s273
      %s275 = sshll.u32 [#allocation8], 4
      %s276 = int_to_ptr.vmem [resolvable:$true] %s275
      %281 = dma.vmem_to_hbm [thread:$0]  %s276, 32, %s4, [#allocation4], 32, 32, 2
    $region33: #{tpu_custom_call.1} parent=1 // pred_fallthru
      _
    // Predicated region
    $region34: #{tpu_custom_call.1} parent=1 // pred_check
      _
    $region35: #{tpu_custom_call.1} parent=1 // pred_check_branch
      %283 = sbr.rel (0) target = $region37
    $region36: #{tpu_custom_call.1} parent=1 // pred_region
      %284 = dma.done [#allocation4], 128
    $region37: #{tpu_custom_call.1} parent=1 // pred_fallthru
      _
    %285 = vsyncpa [#allocation3], 1
    %286 = vsyncpa [#allocation6], 1
    %287 = vsyncpa [#allocation4], 1

</llo_original>
